<compile_context>
chip_gen: v5e
topology: v5e:2x2
jax: 0.10.0
libtpu: 0.0.40
codegen_flags: <defaults>
</compile_context>

<pallas_src>
import jax
import jax.numpy as jnp
from jax.experimental import pallas as pl
from jax.experimental.pallas import tpu as pltpu

_LANES = 128
_MAX_TILE_ROWS = 8192        # 8192*128*4 B = 4 MiB per f32 input per buffer
_CHUNK_ROWS = 512            # in-kernel reduction chunk (bounds VMEM temps ~1 MiB)


def _cdiv(a, b):
    return -(-a // b)


def _round_up(a, m):
    return _cdiv(a, m) * m


def _make_kernel(rows, tile_rows, chunk, inner, needs_mask):
    n_chunks = tile_rows // chunk

    def kernel(pred_ref, targ_ref, mask_ref, out_ref):
        c = pl.program_id(0)
        i = pl.program_id(1)

        @pl.when(i == 0)
        def _():
            out_ref[...] = jnp.zeros_like(out_ref)

        # Logical (unclamped) first row of this block, used for tail masking.
        base_row = (c * inner + i) * tile_rows

        def body(s, carry):
            num_acc, den_acc = carry
            r0 = pl.multiple_of(s * chunk, chunk)
            # Upcast narrow dtypes right after load (v5e has no bf16 VALU).
            p = pred_ref[pl.ds(r0, chunk), :].astype(jnp.float32)
            t = targ_ref[pl.ds(r0, chunk), :].astype(jnp.float32)
            m = mask_ref[pl.ds(r0, chunk), :].astype(jnp.float32)
            res = p - t
            if needs_mask:
                # Rows >= `rows` were never backed by real data (OOB block tail or
                # a clamped duplicate block): mask with where, not a multiply,
                # because 0 * NaN = NaN.
                ridx = base_row + r0 + jax.lax.broadcasted_iota(
                    jnp.int32, (chunk, _LANES), 0)
                valid = ridx < rows
                res = jnp.where(valid, res, 0.0)
                m = jnp.where(valid, m, 0.0)
            # Reduce over the leading (vreg-group) axis: pure VPU adds, no XLU.
            num = (m * res * res).reshape(chunk // 8, 8, _LANES).sum(axis=0)
            den = m.reshape(chunk // 8, 8, _LANES).sum(axis=0)
            return num_acc + num, den_acc + den

        zero = jnp.zeros((8, _LANES), jnp.float32)
        num_acc, den_acc = jax.lax.fori_loop(0, n_chunks, body, (zero, zero))
        out_ref[0, 0, :, :] += num_acc
        out_ref[0, 1, :, :] += den_acc

    return kernel


def mse_loss_pallas(prediction, target, mask):
    """Masked depth MSE loss, batch-based reduction (matches the PyTorch module).

    prediction/target may be float32 or bfloat16; mask may be float/int8/bool.
    Narrow dtypes are streamed as-is and upcast inside the kernel.
    """
    assert prediction.shape == target.shape == mask.shape
    B, H, W = prediction.shape
    n = B * H * W

    if mask.dtype == jnp.bool_:
        mask = mask.astype(jnp.int8)     # 1 B/elem, avoids 1-bit ref corner cases

    itemsizes = [prediction.dtype.itemsize, target.dtype.itemsize, mask.dtype.itemsize]
    # Minimum sublane granularity: 8 rows for pure-f32, 32 covers bf16/int8 packing.
    g_min = 8 if min(itemsizes) == 4 else 32

    # Lane-dense (rows, 128) view. A pad copy only happens when B*H*W is not a
    # multiple of 128*g_min (realistic depth-map shapes are).
    pad_gran = _LANES * g_min
    n_pad = _round_up(n, pad_gran)
    pad = n_pad - n
    rows = n_pad // _LANES

    def _prep(x):
        xf = x.reshape(-1)
        if pad:
            # TODO(synk): zero-pad materializes a copy; only hit for odd B*H*W.
            xf = jnp.pad(xf, (0, pad))
        return xf.reshape(rows, _LANES)

    pred2, targ2, mask2 = _prep(prediction), _prep(target), _prep(mask)

    # ---- grid / tile selection ------------------------------------------------
    nsplit = 2 if rows >= 2 * g_min else 1          # outer parallel axis (2 TCs on v7x)
    per_split = _cdiv(rows, nsplit)
    gran = _CHUNK_ROWS if per_split >= _CHUNK_ROWS else g_min
    tile_rows = min(_MAX_TILE_ROWS, _round_up(per_split, gran))
    chunk = min(tile_rows, _CHUNK_ROWS)             # divides tile_rows by construction
    inner = _cdiv(rows, nsplit * tile_rows)

    num_blocks = nsplit * inner
    last_block = _cdiv(rows, tile_rows) - 1
    needs_mask = num_blocks * tile_rows > rows

    if num_blocks - 1 > last_block:
        # Trailing block(s) of the grid would start past the end of the array:
        # clamp their DMA to the last real block; the kernel masks their logical
        # rows to zero, so the duplicate read contributes nothing.
        in_idx = lambda c, i: (jnp.minimum(c * inner + i, last_block), 0)
    else:
        in_idx = lambda c, i: (c * inner + i, 0)

    in_spec = pl.BlockSpec((tile_rows, _LANES), in_idx)
    out_spec = pl.BlockSpec((1, 2, 8, _LANES), lambda c, i: (c, 0, 0, 0))

    in_bytes = rows * _LANES * sum(itemsizes)
    cost = pl.CostEstimate(
        flops=6 * rows * _LANES,
        transcendentals=0,
        bytes_accessed=in_bytes + nsplit * 2 * 8 * _LANES * 4,
    )
    # Double-buffered inputs + headroom for chunk temps; <= ~42 MiB even for f32
    # inputs at the 8192-row tile (safe on v7x's 64 MiB/TC VMEM).
    vmem_limit = 2 * tile_rows * _LANES * sum(itemsizes) + 16 * 1024 * 1024

    partials = pl.pallas_call(
        _make_kernel(rows, tile_rows, chunk, inner, needs_mask),
        out_shape=jax.ShapeDtypeStruct((nsplit, 2, 8, _LANES), jnp.float32),
        grid_spec=pltpu.PrefetchScalarGridSpec(
            num_scalar_prefetch=0,
            grid=(nsplit, inner),
            in_specs=[in_spec, in_spec, in_spec],
            out_specs=out_spec,
        ),
        compiler_params=pltpu.CompilerParams(
            # TODO(synk): on v7x verify the outer axis shards across both TCs;
            # if it serializes, switch to (pltpu.CORE_PARALLEL, pltpu.ARBITRARY).
            dimension_semantics=("parallel", "arbitrary"),
            vmem_limit_bytes=vmem_limit,
        ),
        cost_estimate=cost,
    )(pred2, targ2, mask2)

    # Tiny final cross-lane reduction + divide in JAX (combines per-core partials).
    num = jnp.sum(partials[:, 0])
    den = jnp.sum(partials[:, 1])
    divisor = 2.0 * den
    return jnp.where(divisor == 0.0, jnp.float32(0.0), num / divisor)


# TODO(synk): reduction='image-based' variant of the module is not implemented
# (the module default is 'batch-based', which is what this kernel computes).


def _mse_loss_ref(prediction, target, mask):
    prediction = prediction.astype(jnp.float32)
    target = target.astype(jnp.float32)
    mask = mask.astype(jnp.float32)
    M = jnp.sum(mask, axis=(1, 2))
    res = prediction - target
    image_loss = jnp.sum(mask * res * res, axis=(1, 2))
    divisor = jnp.sum(2.0 * M)
    return jnp.where(divisor == 0.0, 0.0, jnp.sum(image_loss) / divisor)


if __name__ == "__main__":
    key = jax.random.PRNGKey(0)
    kp, kt, km = jax.random.split(key, 3)

    def _check(p, t, m, rtol=1e-5, atol=1e-6):
        out = jax.block_until_ready(mse_loss_pallas(p, t, m))
        ref = _mse_loss_ref(p, t, m)
        assert jnp.allclose(out, ref, rtol=rtol, atol=atol), (out, ref)

    # 1) Small f32 case, lane-aligned (no-pad path, single block).
    B, H, W = 2, 16, 32
    p = jax.random.normal(kp, (B, H, W), dtype=jnp.float32)
    t = jax.random.normal(kt, (B, H, W), dtype=jnp.float32)
    m = (jax.random.uniform(km, (B, H, W)) > 0.3).astype(jnp.float32)
    _check(p, t, m)

    # 2) Two-way split path (both grid blocks valid, no masking).
    B, H, W = 2, 64, 64
    p = jax.random.normal(kp, (B, H, W), dtype=jnp.float32)
    t = jax.random.normal(kt, (B, H, W), dtype=jnp.float32)
    m = (jax.random.uniform(km, (B, H, W)) > 0.5).astype(jnp.float32)
    _check(p, t, m)

    # 3) Partial last block -> in-kernel OOB row masking.
    B, H, W = 2, 16, 96
    p = jax.random.normal(kp, (B, H, W), dtype=jnp.float32)
    t = jax.random.normal(kt, (B, H, W), dtype=jnp.float32)
    m = (jax.random.uniform(km, (B, H, W)) > 0.5).astype(jnp.float32)
    _check(p, t, m)

    # 4) Ragged size (pad fallback) + all-zero mask (divisor == 0 path).
    B, H, W = 2, 15, 17
    p = jax.random.normal(kp, (B, H, W), dtype=jnp.float32)
    t = jax.random.normal(kt, (B, H, W), dtype=jnp.float32)
    m = (jax.random.uniform(km, (B, H, W)) > 0.5).astype(jnp.float32)
    _check(p, t, m)
    out0 = jax.block_until_ready(mse_loss_pallas(p, t, jnp.zeros_like(m)))
    assert jnp.allclose(out0, 0.0)

    # 5) Narrow dtypes: bf16 pred/target + int8 mask, upcast in-kernel.
    B, H, W = 2, 64, 64
    p = jax.random.normal(kp, (B, H, W), dtype=jnp.float32).astype(jnp.bfloat16)
    t = jax.random.normal(kt, (B, H, W), dtype=jnp.float32).astype(jnp.bfloat16)
    m = (jax.random.uniform(km, (B, H, W)) > 0.4).astype(jnp.int8)
    _check(p, t, m)

    # 6) Large-enough case to exercise inner>1 and the clamped trailing block.
    B, H, W = 9, 512, 512
    p = jax.random.normal(kp, (B, H, W), dtype=jnp.float32)
    t = jax.random.normal(kt, (B, H, W), dtype=jnp.float32)
    m = (jax.random.uniform(km, (B, H, W)) > 0.5).astype(jnp.float32)
    _check(p, t, m)

    print("KERNEL_OK")
</pallas_src>

<mosaic_0001>
module attributes {stable_mosaic.version = 11 : i64} {
  func.func @kernel(%arg0: i32, %arg1: i32, %arg2: memref<8x128xf32, #tpu.memory_space<vmem>>, %arg3: memref<8x128xf32, #tpu.memory_space<vmem>>, %arg4: memref<8x128xf32, #tpu.memory_space<vmem>>, %arg5: memref<1x2x8x128xf32, #tpu.memory_space<vmem>>) attributes {dimension_semantics = [#tpu.dimension_semantics<parallel>, #tpu.dimension_semantics<arbitrary>], iteration_bounds = array<i64: 1, 1>, scalar_prefetch = 0 : i64, scratch_operands = 0 : i64, tpu.core_type = #tpu.core_type<tc>, window_params = [{transform_indices = @transform_0, window_bounds = array<i64: 8, 128>}, {transform_indices = @transform_1, window_bounds = array<i64: 8, 128>}, {transform_indices = @transform_2, window_bounds = array<i64: 8, 128>}, {transform_indices = @transform_3, window_bounds = array<i64: 1, 2, 8, 128>}]} {
    %c0_i32 = arith.constant 0 : i32
    %0 = arith.cmpi eq, %arg1, %c0_i32 : i32
    %1 = arith.extui %0 : i1 to i32
    %c0_i32_0 = arith.constant 0 : i32
    %2 = arith.cmpi ne, %1, %c0_i32_0 : i32
    scf.if %2 {
      %cst_21 = arith.constant 0.000000e+00 : f32
      %33 = vector.broadcast %cst_21 : f32 to vector<1x2x8x128xf32>
      %c0_22 = arith.constant 0 : index
      %c0_23 = arith.constant 0 : index
      %c0_24 = arith.constant 0 : index
      %c0_25 = arith.constant 0 : index
      %34 = vector.load %arg5[%c0_22, %c0_23, %c0_24, %c0_25] : memref<1x2x8x128xf32, #tpu.memory_space<vmem>>, vector<1x2x8x128xf32>
      tpu.vector_store %arg5[%c0_22, %c0_23, %c0_24, %c0_25], %33 {strides = array<i32>} : memref<1x2x8x128xf32, #tpu.memory_space<vmem>>, vector<1x2x8x128xf32>,
    } else {
    }
    %cst = arith.constant 0.000000e+00 : f32
    %3 = vector.broadcast %cst : f32 to vector<8x128xf32>
    %c0_i32_1 = arith.constant 0 : i32
    %c8_i32 = arith.constant 8 : i32
    %4 = arith.muli %c0_i32_1, %c8_i32 : i32
    %5 = tpu.assume_multiple %4, 8 : i32
    %6 = arith.index_cast %5 : i32 to index
    %c0 = arith.constant 0 : index
    %7 = vector.load %arg2[%6, %c0] : memref<8x128xf32, #tpu.memory_space<vmem>>, vector<8x128xf32>
    %8 = arith.index_cast %5 : i32 to index
    %c0_2 = arith.constant 0 : index
    %9 = vector.load %arg3[%8, %c0_2] : memref<8x128xf32, #tpu.memory_space<vmem>>, vector<8x128xf32>
    %10 = arith.index_cast %5 : i32 to index
    %c0_3 = arith.constant 0 : index
    %11 = vector.load %arg4[%10, %c0_3] : memref<8x128xf32, #tpu.memory_space<vmem>>, vector<8x128xf32>
    %12 = arith.subf %7, %9 : vector<8x128xf32>
    %13 = arith.mulf %11, %12 : vector<8x128xf32>
    %14 = arith.mulf %13, %12 : vector<8x128xf32>
    %15 = vector.shape_cast %14 : vector<8x128xf32> to vector<1x8x128xf32>
    %cst_4 = arith.constant dense<0.000000e+00> : vector<8x128xf32>
    %16 = vector.multi_reduction <add>, %15, %cst_4 [0] : vector<1x8x128xf32> to vector<8x128xf32>
    %17 = vector.shape_cast %11 : vector<8x128xf32> to vector<1x8x128xf32>
    %cst_5 = arith.constant dense<0.000000e+00> : vector<8x128xf32>
    %18 = vector.multi_reduction <add>, %17, %cst_5 [0] : vector<1x8x128xf32> to vector<8x128xf32>
    %19 = arith.addf %3, %16 : vector<8x128xf32>
    %20 = arith.addf %3, %18 : vector<8x128xf32>
    %c1_i32 = arith.constant 1 : i32
    %c0_6 = arith.constant 0 : index
    %c0_7 = arith.constant 0 : index
    %c0_8 = arith.constant 0 : index
    %c0_9 = arith.constant 0 : index
    %21 = vector.load %arg5[%c0_6, %c0_7, %c0_8, %c0_9] : memref<1x2x8x128xf32, #tpu.memory_space<vmem>>, vector<1x1x8x128xf32>
    %22 = vector.shape_cast %21 : vector<1x1x8x128xf32> to vector<8x128xf32>
    %23 = arith.addf %22, %19 : vector<8x128xf32>
    %c0_10 = arith.constant 0 : index
    %c0_11 = arith.constant 0 : index
    %c0_12 = arith.constant 0 : index
    %c0_13 = arith.constant 0 : index
    %24 = vector.load %arg5[%c0_10, %c0_11, %c0_12, %c0_13] : memref<1x2x8x128xf32, #tpu.memory_space<vmem>>, vector<1x1x8x128xf32>
    %25 = vector.shape_cast %24 : vector<1x1x8x128xf32> to vector<8x128xf32>
    %26 = vector.shape_cast %23 : vector<8x128xf32> to vector<1x1x8x128xf32>
    tpu.vector_store %arg5[%c0_10, %c0_11, %c0_12, %c0_13], %26 {strides = array<i32>} : memref<1x2x8x128xf32, #tpu.memory_space<vmem>>, vector<1x1x8x128xf32>,
    %c0_14 = arith.constant 0 : index
    %c1 = arith.constant 1 : index
    %c0_15 = arith.constant 0 : index
    %c0_16 = arith.constant 0 : index
    %27 = vector.load %arg5[%c0_14, %c1, %c0_15, %c0_16] : memref<1x2x8x128xf32, #tpu.memory_space<vmem>>, vector<1x1x8x128xf32>
    %28 = vector.shape_cast %27 : vector<1x1x8x128xf32> to vector<8x128xf32>
    %29 = arith.addf %28, %20 : vector<8x128xf32>
    %c0_17 = arith.constant 0 : index
    %c1_18 = arith.constant 1 : index
    %c0_19 = arith.constant 0 : index
    %c0_20 = arith.constant 0 : index
    %30 = vector.load %arg5[%c0_17, %c1_18, %c0_19, %c0_20] : memref<1x2x8x128xf32, #tpu.memory_space<vmem>>, vector<1x1x8x128xf32>
    %31 = vector.shape_cast %30 : vector<1x1x8x128xf32> to vector<8x128xf32>
    %32 = vector.shape_cast %29 : vector<8x128xf32> to vector<1x1x8x128xf32>
    tpu.vector_store %arg5[%c0_17, %c1_18, %c0_19, %c0_20], %32 {strides = array<i32>} : memref<1x2x8x128xf32, #tpu.memory_space<vmem>>, vector<1x1x8x128xf32>,
    return
  }
  func.func @transform_0(%arg0: i32, %arg1: i32) -> (i32, i32) {
    %c1_i32 = arith.constant 1 : i32
    %0 = arith.muli %arg0, %c1_i32 : i32
    %1 = arith.addi %0, %arg1 : i32
    %c0_i32 = arith.constant 0 : i32
    %c0_i32_0 = arith.constant 0 : i32
    return %1, %c0_i32 : i32, i32
  }
  func.func @transform_1(%arg0: i32, %arg1: i32) -> (i32, i32) {
    %c1_i32 = arith.constant 1 : i32
    %0 = arith.muli %arg0, %c1_i32 : i32
    %1 = arith.addi %0, %arg1 : i32
    %c0_i32 = arith.constant 0 : i32
    %c0_i32_0 = arith.constant 0 : i32
    return %1, %c0_i32 : i32, i32
  }
  func.func @transform_2(%arg0: i32, %arg1: i32) -> (i32, i32) {
    %c1_i32 = arith.constant 1 : i32
    %0 = arith.muli %arg0, %c1_i32 : i32
    %1 = arith.addi %0, %arg1 : i32
    %c0_i32 = arith.constant 0 : i32
    %c0_i32_0 = arith.constant 0 : i32
    return %1, %c0_i32 : i32, i32
  }
  func.func @transform_3(%arg0: i32, %arg1: i32) -> (i32, i32, i32, i32) {
    %c0_i32 = arith.constant 0 : i32
    %c0_i32_0 = arith.constant 0 : i32
    %c0_i32_1 = arith.constant 0 : i32
    %c0_i32_2 = arith.constant 0 : i32
    return %arg0, %c0_i32, %c0_i32_0, %c0_i32_1 : i32, i32, i32, i32
  }
}

</mosaic_0001>

<llo_original>
// kernel: tpu_custom_call.1
$region0: #{tpu_custom_call.1}
  #allocation0 [shape = 'u32[]', space=smem, size = 0x4, offset = 0x4, fixed_abs, tag = 'smem constant byte address 0x4 - core index']
  #allocation1 [shape = 'u32[72,128]{1,0:T(1,128)}', space=vmem, size = 0x9000, scoped, tag = 'internal scratch']
  %s0 = inlined_call_operand.hbm [shape: f32[8,128], index: 0, kind: input, shape index: {}]
  %s1 = inlined_call_operand.hbm [shape: f32[8,128], index: 1, kind: input, shape index: {}]
  %s2 = inlined_call_operand.hbm [shape: f32[8,128], index: 2, kind: input, shape index: {}]
  %s3 = inlined_call_operand.hbm [shape: f32[1,2,8,128], index: 3, kind: output, shape index: {}]
  %s4 = sld [smem:[#allocation0]]
  $region38: #{tpu_custom_call.1} parent=0
    _
  %s6 = ssub.s32 1, %s4
  %s7 = scalar_select 0, %s6, %s4
  $region1: #{tpu_custom_call.1} parent=0
    #allocation2 [shape = 'u8[4096]{0}', space=vmem, size = 0x1000, scoped, tag = 'input window, operand 0, single buffered']
    #allocation3 [shape = 's32[1]{0}', space=sflag, size = 0x4, scoped, tag = 'scoped memory for tpu_custom_call.1']
    #allocation4 [shape = 's32[1]{0}', space=sflag, size = 0x4, scoped, tag = 'scoped memory for tpu_custom_call.1']
    #allocation5 [shape = 'u8[4096]{0}', space=vmem, size = 0x1000, scoped, tag = 'input window, operand 1, single buffered']
    #allocation6 [shape = 's32[1]{0}', space=sflag, size = 0x4, scoped, tag = 'scoped memory for tpu_custom_call.1']
    #allocation7 [shape = 'u8[4096]{0}', space=vmem, size = 0x1000, scoped, tag = 'input window, operand 2, single buffered']
    #allocation8 [shape = 'u8[8192]{0}', space=vmem, size = 0x2000, scoped, tag = 'output window, operand 0, single buffered']
    %8 = vsyncpa [#allocation3], 0
    %9 = vsyncpa [#allocation6], 0
    %10 = vsyncpa [#allocation4], 0
    // Predicated region
    $region2: #{tpu_custom_call.1} parent=1 // pred_check
      _
    $region3: #{tpu_custom_call.1} parent=1 // pred_check_branch
      %12 = sbr.rel (0) target = $region5
    $region4: #{tpu_custom_call.1} parent=1 // pred_region
      %s13 = sadd.s32 0, 0
      %15 = vsyncadd [#allocation3], 0
      %s16 = smul.addr %s13, 8
      %s17 = scalar_lea.hbm %s0, %s16
      %s19 = sshll.u32 %s17, 4
      %s20 = int_to_ptr.hbm [resolvable:$true] %s19
      %s21 = sshll.u32 [#allocation2], 4
      %s22 = int_to_ptr.vmem [resolvable:$true] %s21
      %24 = dma.hbm_to_vmem [thread:$0]  %s20, 128, %s22, [#allocation3]
    $region5: #{tpu_custom_call.1} parent=1 // pred_fallthru
      _
    // Predicated region
    $region6: #{tpu_custom_call.1} parent=1 // pred_check
      _
    $region7: #{tpu_custom_call.1} parent=1 // pred_check_branch
      %26 = sbr.rel (0) target = $region9
    $region8: #{tpu_custom_call.1} parent=1 // pred_region
      %s27 = sadd.s32 0, 0
      %29 = vsyncadd [#allocation6], 0
      %s30 = smul.addr %s27, 8
      %s31 = scalar_lea.hbm %s1, %s30
      %s33 = sshll.u32 %s31, 4
      %s34 = int_to_ptr.hbm [resolvable:$true] %s33
      %s35 = sshll.u32 [#allocation5], 4
      %s36 = int_to_ptr.vmem [resolvable:$true] %s35
      %38 = dma.hbm_to_vmem [thread:$0]  %s34, 128, %s36, [#allocation6]
    $region9: #{tpu_custom_call.1} parent=1 // pred_fallthru
      _
    // Predicated region
    $region10: #{tpu_custom_call.1} parent=1 // pred_check
      _
    $region11: #{tpu_custom_call.1} parent=1 // pred_check_branch
      %40 = sbr.rel (0) target = $region13
    $region12: #{tpu_custom_call.1} parent=1 // pred_region
      %s41 = sadd.s32 0, 0
      %43 = vsyncadd [#allocation6], 0
      %s44 = smul.addr %s41, 8
      %s45 = scalar_lea.hbm %s2, %s44
      %s47 = sshll.u32 %s45, 4
      %s48 = int_to_ptr.hbm [resolvable:$true] %s47
      %s49 = sshll.u32 [#allocation7], 4
      %s50 = int_to_ptr.vmem [resolvable:$true] %s49
      %52 = dma.hbm_to_vmem [thread:$0]  %s48, 128, %s50, [#allocation6]
    $region13: #{tpu_custom_call.1} parent=1 // pred_fallthru
      _
    // Predicated region
    $region14: #{tpu_custom_call.1} parent=1 // pred_check
      _
    $region15: #{tpu_custom_call.1} parent=1 // pred_check_branch
      %54 = sbr.rel (0) target = $region17
    $region16: #{tpu_custom_call.1} parent=1 // pred_region
      %56 = dma.done [#allocation3], 128
    $region17: #{tpu_custom_call.1} parent=1 // pred_fallthru
      _
    // Predicated region
    $region18: #{tpu_custom_call.1} parent=1 // pred_check
      _
    $region19: #{tpu_custom_call.1} parent=1 // pred_check_branch
      %58 = sbr.rel (0) target = $region21
    $region20: #{tpu_custom_call.1} parent=1 // pred_region
      %60 = dma.done [#allocation6], 128
    $region21: #{tpu_custom_call.1} parent=1 // pred_fallthru
      _
    // Predicated region
    $region22: #{tpu_custom_call.1} parent=1 // pred_check
      _
    $region23: #{tpu_custom_call.1} parent=1 // pred_check_branch
      %62 = sbr.rel (0) target = $region25
    $region24: #{tpu_custom_call.1} parent=1 // pred_region
      %64 = dma.done [#allocation6], 128
    $region25: #{tpu_custom_call.1} parent=1 // pred_fallthru
      _
    %s65 = sadd.s32 0, 0
    %s66 = sadd.s32 0, 0
    %s67 = sadd.s32 0, 0
    %p68 = scmp.eq.s32.totalorder 0, 0
    // Predicated region
    $region26: #{tpu_custom_call.1} parent=1 // pred_check
      %p69 = pneg %p68
    $region27: #{tpu_custom_call.1} parent=1 // pred_check_branch
      %71 = sbr.rel (%p69) target = $region29
    $region28: #{tpu_custom_call.1} parent=1 // pred_region
      %72 = vst [vmem:[#allocation8] sm:$0xff] 0.0
      %73 = vst [vmem:[#allocation8 + $0x8] sm:$0xff] 0.0
    $region29: #{tpu_custom_call.1} parent=1 // pred_fallthru
      _
    %v74 = vld [vmem:[#allocation2] sm:$0xff]
    %v75 = vld [vmem:[#allocation5] sm:$0xff]
    %v76 = vld [vmem:[#allocation7] sm:$0xff]
    %v77 = vsub.f32 %v74, %v75
    %v78 = vmul.f32 %v76, %v77
    %v79 = vmul.f32 %v78, %v77
    %v80 = vadd.f32 %v79, 0.0
    %v81 = vadd.f32 %v76, 0.0
    %v82 = vadd.f32 %v80, 0.0
    %v83 = vadd.f32 %v81, 0.0
    %v84 = vld [vmem:[#allocation8] sm:$0xff]
    %v85 = vadd.f32 %v84, %v82
    %86 = vst [vmem:[#allocation8] sm:$0xff] %v85
    %s87 = scalar_lea.vmem [#allocation8], 8
    %v88 = vld [vmem:[%s87] sm:$0xff]
    %v89 = vadd.f32 %v88, %v83
    %90 = vst [vmem:[%s87] sm:$0xff] %v89
    // Predicated region
    $region30: #{tpu_custom_call.1} parent=1 // pred_check
      _
    $region31: #{tpu_custom_call.1} parent=1 // pred_check_branch
      %92 = sbr.rel (0) target = $region33
    $region32: #{tpu_custom_call.1} parent=1 // pred_region
      %94 = vsyncadd [#allocation4], 0
      %s95 = sshll.u32 [#allocation8], 4
      %s96 = int_to_ptr.vmem [resolvable:$true] %s95
      %s97 = sshll.u32 %s3, 4
      %s98 = int_to_ptr.hbm [resolvable:$true] %s97
      %103 = dma.vmem_to_hbm [thread:$0]  %s96, 256, %s98, [#allocation4], 128, 128, 8
    $region33: #{tpu_custom_call.1} parent=1 // pred_fallthru
      _
    // Predicated region
    $region34: #{tpu_custom_call.1} parent=1 // pred_check
      _
    $region35: #{tpu_custom_call.1} parent=1 // pred_check_branch
      %105 = sbr.rel (0) target = $region37
    $region36: #{tpu_custom_call.1} parent=1 // pred_region
      %107 = dma.done [#allocation4], 256
    $region37: #{tpu_custom_call.1} parent=1 // pred_fallthru
      _
    %108 = vsyncpa [#allocation3], 1
    %109 = vsyncpa [#allocation6], 1
    %110 = vsyncpa [#allocation4], 1

</llo_original>
